<compile_context>
chip_gen: v7x
topology: tpu7x:2x2x1
jax: 0.10.0
libtpu: 0.0.40
codegen_flags: <defaults>
</compile_context>

<pallas_src>
import functools

import jax
import jax.numpy as jnp
from jax.experimental import pallas as pl
from jax.experimental.pallas import tpu as pltpu


def _largest_divisor_leq(n, k):
    k = max(1, min(n, k))
    while n % k:
        k -= 1
    return k


def _ssim_kernel(x_ref, y_ref, c1_ref, c2_ref, mask_ref, o_ref, *, win_size):
    """One grid step: rb packed rows of shape (H, Wp); writes sum(S) over valid cols."""
    win = win_size
    NP = win * win
    inv_np = jnp.float32(1.0 / NP)
    cov_norm = jnp.float32(NP / (NP - 1.0))

    x = x_ref[...].astype(jnp.float32)            # (rb, H, Wp)
    y = y_ref[...].astype(jnp.float32)
    rb, H, Wp = x.shape
    Ho = H - win + 1
    Wp_out = Wp - win + 1

    # Products computed once per block, then all 5 quantities stacked so the
    # separable box filter is applied in a single pass.
    z = jnp.concatenate([x, y, x * x, y * y, x * y], axis=0)   # (5*rb, H, Wp)

    # Separable VALID box filter: row pass (lane axis) then column pass (sublane axis).
    r = z[:, :, 0:Wp_out]
    for d in range(1, win):
        r = r + z[:, :, d:d + Wp_out]
    c = r[:, 0:Ho, :]
    for d in range(1, win):
        c = c + r[:, d:d + Ho, :]
    c = c * inv_np                                              # (5*rb, Ho, Wp_out)

    ux = c[0 * rb:1 * rb]
    uy = c[1 * rb:2 * rb]
    uxx = c[2 * rb:3 * rb]
    uyy = c[3 * rb:4 * rb]
    uxy = c[4 * rb:5 * rb]

    C1 = c1_ref[...][:, :, 0:Wp_out]                            # (rb, 1, Wp_out)
    C2 = c2_ref[...][:, :, 0:Wp_out]
    mask = mask_ref[...][:, :, 0:Wp_out]                        # (1, 1, Wp_out)

    vx = cov_norm * (uxx - ux * ux)
    vy = cov_norm * (uyy - uy * uy)
    vxy = cov_norm * (uxy - ux * uy)

    A1 = 2.0 * ux * uy + C1
    A2 = 2.0 * vxy + C2
    B1 = ux * ux + uy * uy + C1
    B2 = vx + vy + C2

    # Division moved to the (otherwise idle) EUP via a full-precision reciprocal.
    S = (A1 * A2) * pl.reciprocal(B1 * B2, approx=False)        # (rb, Ho, Wp_out)

    # Single reduction per grid step; cross-image columns are zeroed by the mask.
    o_ref[...] = jnp.sum(S * mask, keepdims=True)               # (1, 1, 1)


def ssim_loss(X, Y, data_range, *, win_size=7, k1=0.01, k2=0.03):
    """X, Y: (N, 1, H, W), data_range: (N,) -> scalar SSIM loss (1 - mean(S))."""
    N, C, H, W = X.shape
    assert C == 1, "SSIMLoss's (1,1,win,win) conv weight implies single-channel input"
    assert H >= win_size and W >= win_size, "image smaller than SSIM window"
    Ho, Wo = H - win_size + 1, W - win_size + 1

    # ---- lane packing: put g images side-by-side along the lane axis --------
    g = max(1, min(N, 128 // W)) if W < 128 else 1
    while N % g:
        g -= 1
    N_rows = N // g
    Wp = g * W

    def pack(a):                                   # (N,1,H,W) -> (N_rows, H, Wp)
        a = a[:, 0]
        if g == 1:
            return a
        return a.reshape(N_rows, g, H, W).transpose(0, 2, 1, 3).reshape(N_rows, H, Wp)

    xp, yp = pack(X), pack(Y)

    # Per-lane C1/C2 (per image) and valid-column mask: tiny (O(N*W)) arrays.
    dr = data_range.astype(jnp.float32).reshape(N_rows, g)
    dr_lane = jnp.repeat(dr, W, axis=1).reshape(N_rows, 1, Wp)
    c1 = (jnp.float32(k1) * dr_lane) ** 2
    c2 = (jnp.float32(k2) * dr_lane) ** 2
    mask = ((jnp.arange(Wp) % W) < Wo).astype(jnp.float32).reshape(1, 1, Wp)

    # ---- block sizing from the f32 working set and per-core VMEM ------------
    try:
        vmem_cap = int(pltpu.get_tpu_info().vmem_capacity_bytes)
    except Exception:
        vmem_cap = 64 * 1024 * 1024               # conservative (v7x per-core VMEM)
    budget = vmem_cap // 2                        # leave headroom for the compiler
    per_row_bytes = H * Wp * (2 * 2 * X.dtype.itemsize   # 2 inputs, double-buffered
                              + 16 * 4)                  # ~16 f32 temps per pixel
    rb = _largest_divisor_leq(N_rows, max(1, min(64, budget // max(per_row_bytes, 1))))
    if N_rows >= 2 and N_rows // rb < 2:          # >= 2 grid steps: v7x megacore
        rb = _largest_divisor_leq(N_rows, N_rows // 2)
    n_steps = N_rows // rb

    # Never request more than 75% of physical VMEM (v7x: 48 MiB of 64 MiB).
    vmem_limit = max(32 * 1024 * 1024, (vmem_cap * 3) // 4)
    vmem_limit = min(vmem_limit, (vmem_cap * 3) // 4)

    kernel = functools.partial(_ssim_kernel, win_size=win_size)

    out = pl.pallas_call(
        kernel,
        out_shape=jax.ShapeDtypeStruct((n_steps, 1, 1), jnp.float32),
        grid=(n_steps,),
        in_specs=[
            pl.BlockSpec((rb, H, Wp), lambda b: (b, 0, 0)),
            pl.BlockSpec((rb, H, Wp), lambda b: (b, 0, 0)),
            pl.BlockSpec((rb, 1, Wp), lambda b: (b, 0, 0)),
            pl.BlockSpec((rb, 1, Wp), lambda b: (b, 0, 0)),
            pl.BlockSpec((1, 1, Wp), lambda b: (0, 0, 0)),
        ],
        out_specs=pl.BlockSpec((1, 1, 1), lambda b: (b, 0, 0)),
        compiler_params=pltpu.CompilerParams(
            dimension_semantics=("parallel",),
            vmem_limit_bytes=int(vmem_limit),
        ),
    )(xp, yp, c1, c2, mask)

    # Finalize in the wrapper: loss = 1 - mean(S) over all N*Ho*Wo valid positions.
    return 1.0 - jnp.sum(out) / jnp.float32(N * Ho * Wo)


def _ref_ssim_loss(X, Y, data_range, *, win_size=7, k1=0.01, k2=0.03):
    """Plain-JAX reference mirroring the PyTorch forward exactly (full f32 conv)."""
    w = jnp.ones((1, 1, win_size, win_size), jnp.float32) / (win_size ** 2)
    conv = lambda z: jax.lax.conv_general_dilated(
        z, w, window_strides=(1, 1), padding="VALID",
        dimension_numbers=("NCHW", "OIHW", "NCHW"),
        precision=jax.lax.Precision.HIGHEST)
    dr = data_range[:, None, None, None]
    C1 = (k1 * dr) ** 2
    C2 = (k2 * dr) ** 2
    ux, uy = conv(X), conv(Y)
    uxx, uyy, uxy = conv(X * X), conv(Y * Y), conv(X * Y)
    NP = win_size ** 2
    cov_norm = NP / (NP - 1)
    vx = cov_norm * (uxx - ux * ux)
    vy = cov_norm * (uyy - uy * uy)
    vxy = cov_norm * (uxy - ux * uy)
    A1, A2 = 2 * ux * uy + C1, 2 * vxy + C2
    B1, B2 = ux ** 2 + uy ** 2 + C1, vx + vy + C2
    S = (A1 * A2) / (B1 * B2)
    return 1 - S.mean()


if __name__ == "__main__":
    key = jax.random.PRNGKey(0)
    kx, ky, kd = jax.random.split(key, 3)

    N, C, H, W = 2, 1, 16, 16
    X = jax.random.uniform(kx, (N, C, H, W), dtype=jnp.float32)
    Y = jax.random.uniform(ky, (N, C, H, W), dtype=jnp.float32)
    data_range = jax.random.uniform(kd, (N,), dtype=jnp.float32) + 0.5

    loss = jax.block_until_ready(ssim_loss(X, Y, data_range))
    ref = jax.block_until_ready(_ref_ssim_loss(X, Y, data_range))

    assert jnp.isfinite(loss), "non-finite Pallas result"
    assert jnp.allclose(loss, ref, rtol=1e-4, atol=1e-5), (loss, ref)
    print("KERNEL_OK")
</pallas_src>

<mosaic_0001>
module attributes {stable_mosaic.version = 11 : i64} {
  func.func @_ssim_kernel(%arg0: i32, %arg1: memref<1x16x32xf32, #tpu.memory_space<vmem>>, %arg2: memref<1x16x32xf32, #tpu.memory_space<vmem>>, %arg3: memref<1x1x32xf32, #tpu.memory_space<vmem>>, %arg4: memref<1x1x32xf32, #tpu.memory_space<vmem>>, %arg5: memref<1x1x32xf32, #tpu.memory_space<vmem>>, %arg6: memref<1x1x1xf32, #tpu.memory_space<vmem>>) attributes {dimension_semantics = [#tpu.dimension_semantics<parallel>], iteration_bounds = array<i64: 1>, scalar_prefetch = 0 : i64, scratch_operands = 0 : i64, tpu.core_type = #tpu.core_type<tc>, window_params = [{transform_indices = @transform_0, window_bounds = array<i64: 1, 16, 32>}, {transform_indices = @transform_1, window_bounds = array<i64: 1, 16, 32>}, {transform_indices = @transform_2, window_bounds = array<i64: 1, 1, 32>}, {transform_indices = @transform_3, window_bounds = array<i64: 1, 1, 32>}, {pipeline_mode = #tpu.pipeline_mode<synchronous>, transform_indices = @transform_4, window_bounds = array<i64: 1, 1, 32>}, {transform_indices = @transform_5, window_bounds = array<i64: 1, 1, 1>}]} {
    %c0 = arith.constant 0 : index
    %c0_0 = arith.constant 0 : index
    %c0_1 = arith.constant 0 : index
    %0 = vector.load %arg1[%c0, %c0_0, %c0_1] : memref<1x16x32xf32, #tpu.memory_space<vmem>>, vector<1x16x32xf32>
    %c0_2 = arith.constant 0 : index
    %c0_3 = arith.constant 0 : index
    %c0_4 = arith.constant 0 : index
    %1 = vector.load %arg2[%c0_2, %c0_3, %c0_4] : memref<1x16x32xf32, #tpu.memory_space<vmem>>, vector<1x16x32xf32>
    %2 = arith.mulf %0, %0 : vector<1x16x32xf32>
    %3 = arith.mulf %1, %1 : vector<1x16x32xf32>
    %4 = arith.mulf %0, %1 : vector<1x16x32xf32>
    %5 = tpu.concatenate %0, %1, %2, %3, %4 in 0 : vector<1x16x32xf32>, vector<1x16x32xf32>, vector<1x16x32xf32>, vector<1x16x32xf32>, vector<1x16x32xf32> -> vector<5x16x32xf32>
    %6 = vector.extract_strided_slice %5 {offsets = [0, 0, 0], sizes = [5, 16, 26], strides = [1, 1, 1]} : vector<5x16x32xf32> to vector<5x16x26xf32>
    %7 = vector.extract_strided_slice %5 {offsets = [0, 0, 1], sizes = [5, 16, 26], strides = [1, 1, 1]} : vector<5x16x32xf32> to vector<5x16x26xf32>
    %8 = arith.addf %6, %7 : vector<5x16x26xf32>
    %9 = vector.extract_strided_slice %5 {offsets = [0, 0, 2], sizes = [5, 16, 26], strides = [1, 1, 1]} : vector<5x16x32xf32> to vector<5x16x26xf32>
    %10 = arith.addf %8, %9 : vector<5x16x26xf32>
    %11 = vector.extract_strided_slice %5 {offsets = [0, 0, 3], sizes = [5, 16, 26], strides = [1, 1, 1]} : vector<5x16x32xf32> to vector<5x16x26xf32>
    %12 = arith.addf %10, %11 : vector<5x16x26xf32>
    %13 = vector.extract_strided_slice %5 {offsets = [0, 0, 4], sizes = [5, 16, 26], strides = [1, 1, 1]} : vector<5x16x32xf32> to vector<5x16x26xf32>
    %14 = arith.addf %12, %13 : vector<5x16x26xf32>
    %15 = vector.extract_strided_slice %5 {offsets = [0, 0, 5], sizes = [5, 16, 26], strides = [1, 1, 1]} : vector<5x16x32xf32> to vector<5x16x26xf32>
    %16 = arith.addf %14, %15 : vector<5x16x26xf32>
    %17 = vector.extract_strided_slice %5 {offsets = [0, 0, 6], sizes = [5, 16, 26], strides = [1, 1, 1]} : vector<5x16x32xf32> to vector<5x16x26xf32>
    %18 = arith.addf %16, %17 : vector<5x16x26xf32>
    %19 = vector.extract_strided_slice %18 {offsets = [0, 0, 0], sizes = [5, 10, 26], strides = [1, 1, 1]} : vector<5x16x26xf32> to vector<5x10x26xf32>
    %20 = vector.extract_strided_slice %18 {offsets = [0, 1, 0], sizes = [5, 10, 26], strides = [1, 1, 1]} : vector<5x16x26xf32> to vector<5x10x26xf32>
    %21 = arith.addf %19, %20 : vector<5x10x26xf32>
    %22 = vector.extract_strided_slice %18 {offsets = [0, 2, 0], sizes = [5, 10, 26], strides = [1, 1, 1]} : vector<5x16x26xf32> to vector<5x10x26xf32>
    %23 = arith.addf %21, %22 : vector<5x10x26xf32>
    %24 = vector.extract_strided_slice %18 {offsets = [0, 3, 0], sizes = [5, 10, 26], strides = [1, 1, 1]} : vector<5x16x26xf32> to vector<5x10x26xf32>
    %25 = arith.addf %23, %24 : vector<5x10x26xf32>
    %26 = vector.extract_strided_slice %18 {offsets = [0, 4, 0], sizes = [5, 10, 26], strides = [1, 1, 1]} : vector<5x16x26xf32> to vector<5x10x26xf32>
    %27 = arith.addf %25, %26 : vector<5x10x26xf32>
    %28 = vector.extract_strided_slice %18 {offsets = [0, 5, 0], sizes = [5, 10, 26], strides = [1, 1, 1]} : vector<5x16x26xf32> to vector<5x10x26xf32>
    %29 = arith.addf %27, %28 : vector<5x10x26xf32>
    %30 = vector.extract_strided_slice %18 {offsets = [0, 6, 0], sizes = [5, 10, 26], strides = [1, 1, 1]} : vector<5x16x26xf32> to vector<5x10x26xf32>
    %31 = arith.addf %29, %30 : vector<5x10x26xf32>
    %cst = arith.constant 0.0204081628 : f32
    %32 = vector.broadcast %cst : f32 to vector<5x10x26xf32>
    %33 = arith.mulf %31, %32 : vector<5x10x26xf32>
    %34 = vector.extract_strided_slice %33 {offsets = [0, 0, 0], sizes = [1, 10, 26], strides = [1, 1, 1]} : vector<5x10x26xf32> to vector<1x10x26xf32>
    %35 = vector.extract_strided_slice %33 {offsets = [1, 0, 0], sizes = [1, 10, 26], strides = [1, 1, 1]} : vector<5x10x26xf32> to vector<1x10x26xf32>
    %36 = vector.extract_strided_slice %33 {offsets = [2, 0, 0], sizes = [1, 10, 26], strides = [1, 1, 1]} : vector<5x10x26xf32> to vector<1x10x26xf32>
    %37 = vector.extract_strided_slice %33 {offsets = [3, 0, 0], sizes = [1, 10, 26], strides = [1, 1, 1]} : vector<5x10x26xf32> to vector<1x10x26xf32>
    %38 = vector.extract_strided_slice %33 {offsets = [4, 0, 0], sizes = [1, 10, 26], strides = [1, 1, 1]} : vector<5x10x26xf32> to vector<1x10x26xf32>
    %c0_5 = arith.constant 0 : index
    %c0_6 = arith.constant 0 : index
    %c0_7 = arith.constant 0 : index
    %39 = vector.load %arg3[%c0_5, %c0_6, %c0_7] : memref<1x1x32xf32, #tpu.memory_space<vmem>>, vector<1x1x32xf32>
    %40 = vector.extract_strided_slice %39 {offsets = [0, 0, 0], sizes = [1, 1, 26], strides = [1, 1, 1]} : vector<1x1x32xf32> to vector<1x1x26xf32>
    %c0_8 = arith.constant 0 : index
    %c0_9 = arith.constant 0 : index
    %c0_10 = arith.constant 0 : index
    %41 = vector.load %arg4[%c0_8, %c0_9, %c0_10] : memref<1x1x32xf32, #tpu.memory_space<vmem>>, vector<1x1x32xf32>
    %42 = vector.extract_strided_slice %41 {offsets = [0, 0, 0], sizes = [1, 1, 26], strides = [1, 1, 1]} : vector<1x1x32xf32> to vector<1x1x26xf32>
    %c0_11 = arith.constant 0 : index
    %c0_12 = arith.constant 0 : index
    %c0_13 = arith.constant 0 : index
    %43 = vector.load %arg5[%c0_11, %c0_12, %c0_13] : memref<1x1x32xf32, #tpu.memory_space<vmem>>, vector<1x1x32xf32>
    %44 = vector.extract_strided_slice %43 {offsets = [0, 0, 0], sizes = [1, 1, 26], strides = [1, 1, 1]} : vector<1x1x32xf32> to vector<1x1x26xf32>
    %45 = arith.mulf %34, %34 : vector<1x10x26xf32>
    %46 = arith.subf %36, %45 : vector<1x10x26xf32>
    %cst_14 = arith.constant 1.02083337 : f32
    %47 = vector.broadcast %cst_14 : f32 to vector<1x10x26xf32>
    %48 = arith.mulf %47, %46 : vector<1x10x26xf32>
    %49 = arith.mulf %35, %35 : vector<1x10x26xf32>
    %50 = arith.subf %37, %49 : vector<1x10x26xf32>
    %cst_15 = arith.constant 1.02083337 : f32
    %51 = vector.broadcast %cst_15 : f32 to vector<1x10x26xf32>
    %52 = arith.mulf %51, %50 : vector<1x10x26xf32>
    %53 = arith.mulf %34, %35 : vector<1x10x26xf32>
    %54 = arith.subf %38, %53 : vector<1x10x26xf32>
    %cst_16 = arith.constant 1.02083337 : f32
    %55 = vector.broadcast %cst_16 : f32 to vector<1x10x26xf32>
    %56 = arith.mulf %55, %54 : vector<1x10x26xf32>
    %cst_17 = arith.constant 2.000000e+00 : f32
    %57 = vector.broadcast %cst_17 : f32 to vector<1x10x26xf32>
    %58 = arith.mulf %57, %34 : vector<1x10x26xf32>
    %59 = arith.mulf %58, %35 : vector<1x10x26xf32>
    %60 = vector.broadcast %40 : vector<1x1x26xf32> to vector<1x10x26xf32>
    %61 = arith.addf %59, %60 : vector<1x10x26xf32>
    %cst_18 = arith.constant 2.000000e+00 : f32
    %62 = vector.broadcast %cst_18 : f32 to vector<1x10x26xf32>
    %63 = arith.mulf %62, %56 : vector<1x10x26xf32>
    %64 = vector.broadcast %42 : vector<1x1x26xf32> to vector<1x10x26xf32>
    %65 = arith.addf %63, %64 : vector<1x10x26xf32>
    %66 = arith.mulf %34, %34 : vector<1x10x26xf32>
    %67 = arith.mulf %35, %35 : vector<1x10x26xf32>
    %68 = arith.addf %66, %67 : vector<1x10x26xf32>
    %69 = vector.broadcast %40 : vector<1x1x26xf32> to vector<1x10x26xf32>
    %70 = arith.addf %68, %69 : vector<1x10x26xf32>
    %71 = arith.addf %48, %52 : vector<1x10x26xf32>
    %72 = vector.broadcast %42 : vector<1x1x26xf32> to vector<1x10x26xf32>
    %73 = arith.addf %71, %72 : vector<1x10x26xf32>
    %74 = arith.mulf %61, %65 : vector<1x10x26xf32>
    %75 = arith.mulf %70, %73 : vector<1x10x26xf32>
    %76 = tpu.reciprocal %75 : vector<1x10x26xf32> -> vector<1x10x26xf32>
    %77 = arith.mulf %74, %76 : vector<1x10x26xf32>
    %78 = vector.broadcast %44 : vector<1x1x26xf32> to vector<1x10x26xf32>
    %79 = arith.mulf %77, %78 : vector<1x10x26xf32>
    %80 = vector.shape_cast %79 : vector<1x10x26xf32> to vector<1x1x10x26xf32>
    %cst_19 = arith.constant dense<0.000000e+00> : vector<1xf32>
    %81 = vector.multi_reduction <add>, %80, %cst_19 [1, 2, 3] : vector<1x1x10x26xf32> to vector<1xf32>
    %82 = vector.shape_cast %81 : vector<1xf32> to vector<1x1x1x1xf32>
    %83 = vector.extract %82[0, 0, 0, 0] : f32 from vector<1x1x1x1xf32>
    %84 = vector.broadcast %83 : f32 to vector<1x1x1xf32>
    %c0_20 = arith.constant 0 : index
    %c0_21 = arith.constant 0 : index
    %c0_22 = arith.constant 0 : index
    %85 = vector.load %arg6[%c0_20, %c0_21, %c0_22] : memref<1x1x1xf32, #tpu.memory_space<vmem>>, vector<1x1x1xf32>
    tpu.vector_store %arg6[%c0_20, %c0_21, %c0_22], %84 {strides = array<i32>} : memref<1x1x1xf32, #tpu.memory_space<vmem>>, vector<1x1x1xf32>,
    return
  }
  func.func @transform_0(%arg0: i32) -> (i32, i32, i32) {
    %c0_i32 = arith.constant 0 : i32
    %c0_i32_0 = arith.constant 0 : i32
    %c0_i32_1 = arith.constant 0 : i32
    return %arg0, %c0_i32, %c0_i32_0 : i32, i32, i32
  }
  func.func @transform_1(%arg0: i32) -> (i32, i32, i32) {
    %c0_i32 = arith.constant 0 : i32
    %c0_i32_0 = arith.constant 0 : i32
    %c0_i32_1 = arith.constant 0 : i32
    return %arg0, %c0_i32, %c0_i32_0 : i32, i32, i32
  }
  func.func @transform_2(%arg0: i32) -> (i32, i32, i32) {
    %c0_i32 = arith.constant 0 : i32
    %c0_i32_0 = arith.constant 0 : i32
    %c0_i32_1 = arith.constant 0 : i32
    return %arg0, %c0_i32, %c0_i32_0 : i32, i32, i32
  }
  func.func @transform_3(%arg0: i32) -> (i32, i32, i32) {
    %c0_i32 = arith.constant 0 : i32
    %c0_i32_0 = arith.constant 0 : i32
    %c0_i32_1 = arith.constant 0 : i32
    return %arg0, %c0_i32, %c0_i32_0 : i32, i32, i32
  }
  func.func @transform_4(%arg0: i32) -> (i32, i32, i32) {
    %c0_i32 = arith.constant 0 : i32
    %c0_i32_0 = arith.constant 0 : i32
    %c0_i32_1 = arith.constant 0 : i32
    %c0_i32_2 = arith.constant 0 : i32
    return %c0_i32, %c0_i32_0, %c0_i32_1 : i32, i32, i32
  }
  func.func @transform_5(%arg0: i32) -> (i32, i32, i32) {
    %c0_i32 = arith.constant 0 : i32
    %c0_i32_0 = arith.constant 0 : i32
    %c0_i32_1 = arith.constant 0 : i32
    return %arg0, %c0_i32, %c0_i32_0 : i32, i32, i32
  }
}

</mosaic_0001>

<llo_original>
// kernel: tpu_custom_call.1
$region0: #{tpu_custom_call.1}
  #allocation0 [shape = 'u32[]', space=smem, size = 0x4, offset = 0x4, fixed_abs, tag = 'smem constant byte address 0x4 - core index']
  #allocation1 [shape = 'u32[144,128]{1,0:T(1,128)}', space=vmem, size = 0x12000, scoped, tag = 'internal scratch']
  %s0 = inlined_call_operand.hbm [shape: f32[1,16,32], index: 0, kind: input, shape index: {}]
  %s1 = inlined_call_operand.hbm [shape: f32[1,16,32], index: 1, kind: input, shape index: {}]
  %s2 = inlined_call_operand.vmem [shape: f32[1,1,32], index: 2, kind: input, shape index: {}]
  %s3 = inlined_call_operand.vmem [shape: f32[1,1,32], index: 3, kind: input, shape index: {}]
  %s4 = inlined_call_operand.vmem [shape: f32[1,1,32], index: 4, kind: input, shape index: {}]
  %s5 = inlined_call_operand.hbm [shape: f32[1,1,1], index: 5, kind: output, shape index: {}]
  %s6 = sld [smem:[#allocation0]]
  $region38: #{tpu_custom_call.1} parent=0
    _
  %s8 = ssub.s32 1, %s6
  %s9 = scalar_select 0, %s8, %s6
  $region1: #{tpu_custom_call.1} parent=0
    #allocation2 [shape = 'u8[8192]{0}', space=vmem, size = 0x2000, scoped, tag = 'input window, operand 0, single buffered']
    #allocation3 [shape = 's32[1]{0}', space=sflag, size = 0x4, scoped, tag = 'scoped memory for tpu_custom_call.1']
    #allocation4 [shape = 's32[1]{0}', space=sflag, size = 0x4, scoped, tag = 'scoped memory for tpu_custom_call.1']
    #allocation5 [shape = 'u8[8192]{0}', space=vmem, size = 0x2000, scoped, tag = 'input window, operand 1, single buffered']
    #allocation6 [shape = 's32[1]{0}', space=sflag, size = 0x4, scoped, tag = 'scoped memory for tpu_custom_call.1']
    #allocation7 [shape = 'u8[512]{0}', space=vmem, size = 0x400, scoped, tag = 'output window, operand 0, single buffered']
    %10 = vsyncpa [#allocation3], 0
    %11 = vsyncpa [#allocation6], 0
    %12 = vsyncpa [#allocation4], 0
    // Predicated region
    $region2: #{tpu_custom_call.1} parent=1 // pred_check
      _
    $region3: #{tpu_custom_call.1} parent=1 // pred_check_branch
      %14 = sbr.rel (0) target = $region5
    $region4: #{tpu_custom_call.1} parent=1 // pred_region
      %s16 = ssub.s32 256, 256
      %17 = vsyncadd [#allocation3], %s16
      %s18 = sshll.u32 [#allocation2], 4
      %s19 = int_to_ptr.vmem [resolvable:$true] %s18
      %24 = dma.hbm_to_vmem [thread:$0]  %s0, 256, %s19, [#allocation3], 128, 128, 8
    $region5: #{tpu_custom_call.1} parent=1 // pred_fallthru
      _
    // Predicated region
    $region6: #{tpu_custom_call.1} parent=1 // pred_check
      _
    $region7: #{tpu_custom_call.1} parent=1 // pred_check_branch
      %26 = sbr.rel (0) target = $region9
    $region8: #{tpu_custom_call.1} parent=1 // pred_region
      %s28 = ssub.s32 256, 256
      %29 = vsyncadd [#allocation6], %s28
      %s30 = sshll.u32 [#allocation5], 4
      %s31 = int_to_ptr.vmem [resolvable:$true] %s30
      %36 = dma.hbm_to_vmem [thread:$0]  %s1, 256, %s31, [#allocation6], 128, 128, 8
    $region9: #{tpu_custom_call.1} parent=1 // pred_fallthru
      _
    // Predicated region
    $region10: #{tpu_custom_call.1} parent=1 // pred_check
      _
    $region11: #{tpu_custom_call.1} parent=1 // pred_check_branch
      %38 = sbr.rel (0) target = $region13
    $region12: #{tpu_custom_call.1} parent=1 // pred_region
      _
    $region13: #{tpu_custom_call.1} parent=1 // pred_fallthru
      _
    // Predicated region
    $region14: #{tpu_custom_call.1} parent=1 // pred_check
      _
    $region15: #{tpu_custom_call.1} parent=1 // pred_check_branch
      %40 = sbr.rel (0) target = $region17
    $region16: #{tpu_custom_call.1} parent=1 // pred_region
      _
    $region17: #{tpu_custom_call.1} parent=1 // pred_fallthru
      _
    // Predicated region
    $region18: #{tpu_custom_call.1} parent=1 // pred_check
      _
    $region19: #{tpu_custom_call.1} parent=1 // pred_check_branch
      %42 = sbr.rel (0) target = $region21
    $region20: #{tpu_custom_call.1} parent=1 // pred_region
      _
    $region21: #{tpu_custom_call.1} parent=1 // pred_fallthru
      _
    // Predicated region
    $region22: #{tpu_custom_call.1} parent=1 // pred_check
      _
    $region23: #{tpu_custom_call.1} parent=1 // pred_check_branch
      %44 = sbr.rel (0) target = $region25
    $region24: #{tpu_custom_call.1} parent=1 // pred_region
      %45 = dma.done [#allocation3], 256
    $region25: #{tpu_custom_call.1} parent=1 // pred_fallthru
      _
    // Predicated region
    $region26: #{tpu_custom_call.1} parent=1 // pred_check
      _
    $region27: #{tpu_custom_call.1} parent=1 // pred_check_branch
      %47 = sbr.rel (0) target = $region29
    $region28: #{tpu_custom_call.1} parent=1 // pred_region
      %48 = dma.done [#allocation6], 256
    $region29: #{tpu_custom_call.1} parent=1 // pred_fallthru
      _
    %v49 = vld [vmem:[#allocation2] sm:$0xff]
    %v50 = vld [vmem:[#allocation2 + $0x8] sm:$0xff]
    %v51 = vld [vmem:[#allocation5] sm:$0xff]
    %v52 = vld [vmem:[#allocation5 + $0x8] sm:$0xff]
    %v53 = vmul.f32 %v49, %v49
    %v54 = vmul.f32 %v50, %v50
    %v55 = vmul.f32 %v51, %v51
    %v56 = vmul.f32 %v52, %v52
    %v57 = vmul.f32 %v49, %v51
    %v58 = vmul.f32 %v50, %v52
    %69 = vrot.lane.b32.xlu0 %v49, 127
    %v70 = vpop.permute.xlu0 %69
    %71 = vrot.lane.b32.xlu0 %v50, 127
    %v72 = vpop.permute.xlu0 %71
    %73 = vrot.lane.b32.xlu0 %v51, 127
    %v74 = vpop.permute.xlu0 %73
    %75 = vrot.lane.b32.xlu0 %v52, 127
    %v76 = vpop.permute.xlu0 %75
    %77 = vrot.lane.b32.xlu0 %v53, 127
    %v78 = vpop.permute.xlu0 %77
    %79 = vrot.lane.b32.xlu0 %v54, 127
    %v80 = vpop.permute.xlu0 %79
    %81 = vrot.lane.b32.xlu0 %v55, 127
    %v82 = vpop.permute.xlu0 %81
    %83 = vrot.lane.b32.xlu0 %v56, 127
    %v84 = vpop.permute.xlu0 %83
    %85 = vrot.lane.b32.xlu0 %v57, 127
    %v86 = vpop.permute.xlu0 %85
    %87 = vrot.lane.b32.xlu0 %v58, 127
    %v88 = vpop.permute.xlu0 %87
    %v99 = vadd.f32 %v49, %v70
    %v100 = vadd.f32 %v50, %v72
    %v101 = vadd.f32 %v51, %v74
    %v102 = vadd.f32 %v52, %v76
    %v103 = vadd.f32 %v53, %v78
    %v104 = vadd.f32 %v54, %v80
    %v105 = vadd.f32 %v55, %v82
    %v106 = vadd.f32 %v56, %v84
    %v107 = vadd.f32 %v57, %v86
    %v108 = vadd.f32 %v58, %v88
    %109 = vrot.lane.b32.xlu0 %v49, 126
    %v110 = vpop.permute.xlu0 %109
    %111 = vrot.lane.b32.xlu0 %v50, 126
    %v112 = vpop.permute.xlu0 %111
    %113 = vrot.lane.b32.xlu0 %v51, 126
    %v114 = vpop.permute.xlu0 %113
    %115 = vrot.lane.b32.xlu0 %v52, 126
    %v116 = vpop.permute.xlu0 %115
    %117 = vrot.lane.b32.xlu0 %v53, 126
    %v118 = vpop.permute.xlu0 %117
    %119 = vrot.lane.b32.xlu0 %v54, 126
    %v120 = vpop.permute.xlu0 %119
    %121 = vrot.lane.b32.xlu0 %v55, 126
    %v122 = vpop.permute.xlu0 %121
    %123 = vrot.lane.b32.xlu0 %v56, 126
    %v124 = vpop.permute.xlu0 %123
    %125 = vrot.lane.b32.xlu0 %v57, 126
    %v126 = vpop.permute.xlu0 %125
    %127 = vrot.lane.b32.xlu0 %v58, 126
    %v128 = vpop.permute.xlu0 %127
    %v139 = vadd.f32 %v99, %v110
    %v140 = vadd.f32 %v100, %v112
    %v141 = vadd.f32 %v101, %v114
    %v142 = vadd.f32 %v102, %v116
    %v143 = vadd.f32 %v103, %v118
    %v144 = vadd.f32 %v104, %v120
    %v145 = vadd.f32 %v105, %v122
    %v146 = vadd.f32 %v106, %v124
    %v147 = vadd.f32 %v107, %v126
    %v148 = vadd.f32 %v108, %v128
    %149 = vrot.lane.b32.xlu0 %v49, 125
    %v150 = vpop.permute.xlu0 %149
    %151 = vrot.lane.b32.xlu0 %v50, 125
    %v152 = vpop.permute.xlu0 %151
    %153 = vrot.lane.b32.xlu0 %v51, 125
    %v154 = vpop.permute.xlu0 %153
    %155 = vrot.lane.b32.xlu0 %v52, 125
    %v156 = vpop.permute.xlu0 %155
    %157 = vrot.lane.b32.xlu0 %v53, 125
    %v158 = vpop.permute.xlu0 %157
    %159 = vrot.lane.b32.xlu0 %v54, 125
    %v160 = vpop.permute.xlu0 %159
    %161 = vrot.lane.b32.xlu0 %v55, 125
    %v162 = vpop.permute.xlu0 %161
    %163 = vrot.lane.b32.xlu0 %v56, 125
    %v164 = vpop.permute.xlu0 %163
    %165 = vrot.lane.b32.xlu0 %v57, 125
    %v166 = vpop.permute.xlu0 %165
    %167 = vrot.lane.b32.xlu0 %v58, 125
    %v168 = vpop.permute.xlu0 %167
    %v179 = vadd.f32 %v139, %v150
    %v180 = vadd.f32 %v140, %v152
    %v181 = vadd.f32 %v141, %v154
    %v182 = vadd.f32 %v142, %v156
    %v183 = vadd.f32 %v143, %v158
    %v184 = vadd.f32 %v144, %v160
    %v185 = vadd.f32 %v145, %v162
    %v186 = vadd.f32 %v146, %v164
    %v187 = vadd.f32 %v147, %v166
    %v188 = vadd.f32 %v148, %v168
    %189 = vrot.lane.b32.xlu0 %v49, 124
    %v190 = vpop.permute.xlu0 %189
    %191 = vrot.lane.b32.xlu0 %v50, 124
    %v192 = vpop.permute.xlu0 %191
    %193 = vrot.lane.b32.xlu0 %v51, 124
    %v194 = vpop.permute.xlu0 %193
    %195 = vrot.lane.b32.xlu0 %v52, 124
    %v196 = vpop.permute.xlu0 %195
    %197 = vrot.lane.b32.xlu0 %v53, 124
    %v198 = vpop.permute.xlu0 %197
    %199 = vrot.lane.b32.xlu0 %v54, 124
    %v200 = vpop.permute.xlu0 %199
    %201 = vrot.lane.b32.xlu0 %v55, 124
    %v202 = vpop.permute.xlu0 %201
    %203 = vrot.lane.b32.xlu0 %v56, 124
    %v204 = vpop.permute.xlu0 %203
    %205 = vrot.lane.b32.xlu0 %v57, 124
    %v206 = vpop.permute.xlu0 %205
    %207 = vrot.lane.b32.xlu0 %v58, 124
    %v208 = vpop.permute.xlu0 %207
    %v219 = vadd.f32 %v179, %v190
    %v220 = vadd.f32 %v180, %v192
    %v221 = vadd.f32 %v181, %v194
    %v222 = vadd.f32 %v182, %v196
    %v223 = vadd.f32 %v183, %v198
    %v224 = vadd.f32 %v184, %v200
    %v225 = vadd.f32 %v185, %v202
    %v226 = vadd.f32 %v186, %v204
    %v227 = vadd.f32 %v187, %v206
    %v228 = vadd.f32 %v188, %v208
    %229 = vrot.lane.b32.xlu0 %v49, 123
    %v230 = vpop.permute.xlu0 %229
    %231 = vrot.lane.b32.xlu0 %v50, 123
    %v232 = vpop.permute.xlu0 %231
    %233 = vrot.lane.b32.xlu0 %v51, 123
    %v234 = vpop.permute.xlu0 %233
    %235 = vrot.lane.b32.xlu0 %v52, 123
    %v236 = vpop.permute.xlu0 %235
    %237 = vrot.lane.b32.xlu0 %v53, 123
    %v238 = vpop.permute.xlu0 %237
    %239 = vrot.lane.b32.xlu0 %v54, 123
    %v240 = vpop.permute.xlu0 %239
    %241 = vrot.lane.b32.xlu0 %v55, 123
    %v242 = vpop.permute.xlu0 %241
    %243 = vrot.lane.b32.xlu0 %v56, 123
    %v244 = vpop.permute.xlu0 %243
    %245 = vrot.lane.b32.xlu0 %v57, 123
    %v246 = vpop.permute.xlu0 %245
    %247 = vrot.lane.b32.xlu0 %v58, 123
    %v248 = vpop.permute.xlu0 %247
    %v259 = vadd.f32 %v219, %v230
    %v260 = vadd.f32 %v220, %v232
    %v261 = vadd.f32 %v221, %v234
    %v262 = vadd.f32 %v222, %v236
    %v263 = vadd.f32 %v223, %v238
    %v264 = vadd.f32 %v224, %v240
    %v265 = vadd.f32 %v225, %v242
    %v266 = vadd.f32 %v226, %v244
    %v267 = vadd.f32 %v227, %v246
    %v268 = vadd.f32 %v228, %v248
    %269 = vrot.lane.b32.xlu0 %v49, 122
    %v270 = vpop.permute.xlu0 %269
    %271 = vrot.lane.b32.xlu0 %v50, 122
    %v272 = vpop.permute.xlu0 %271
    %273 = vrot.lane.b32.xlu0 %v51, 122
    %v274 = vpop.permute.xlu0 %273
    %275 = vrot.lane.b32.xlu0 %v52, 122
    %v276 = vpop.permute.xlu0 %275
    %277 = vrot.lane.b32.xlu0 %v53, 122
    %v278 = vpop.permute.xlu0 %277
    %279 = vrot.lane.b32.xlu0 %v54, 122
    %v280 = vpop.permute.xlu0 %279
    %281 = vrot.lane.b32.xlu0 %v55, 122
    %v282 = vpop.permute.xlu0 %281
    %283 = vrot.lane.b32.xlu0 %v56, 122
    %v284 = vpop.permute.xlu0 %283
    %285 = vrot.lane.b32.xlu0 %v57, 122
    %v286 = vpop.permute.xlu0 %285
    %287 = vrot.lane.b32.xlu0 %v58, 122
    %v288 = vpop.permute.xlu0 %287
    %v299 = vadd.f32 %v259, %v270
    %v300 = vadd.f32 %v260, %v272
    %v301 = vadd.f32 %v261, %v274
    %v302 = vadd.f32 %v262, %v276
    %v303 = vadd.f32 %v263, %v278
    %v304 = vadd.f32 %v264, %v280
    %v305 = vadd.f32 %v265, %v282
    %v306 = vadd.f32 %v266, %v284
    %v307 = vadd.f32 %v267, %v286
    %v308 = vadd.f32 %v268, %v288
    %vm319 = vcmask 1046528
    %v320 = vrot.slane %v299, 1
    %v321 = vrot.slane %v300, 1
    %v322 = vsel %vm319, %v320, %v321
    %v323 = vrot.slane %v301, 1
    %v324 = vrot.slane %v302, 1
    %v325 = vsel %vm319, %v323, %v324
    %v326 = vrot.slane %v303, 1
    %v327 = vrot.slane %v304, 1
    %v328 = vsel %vm319, %v326, %v327
    %v329 = vrot.slane %v305, 1
    %v330 = vrot.slane %v306, 1
    %v331 = vsel %vm319, %v329, %v330
    %v332 = vrot.slane %v307, 1
    %v333 = vrot.slane %v308, 1
    %v334 = vsel %vm319, %v332, %v333
    %v345 = vadd.f32 %v299, %v322
    %v346 = vadd.f32 %v300, %v321
    %v347 = vadd.f32 %v301, %v325
    %v348 = vadd.f32 %v302, %v324
    %v349 = vadd.f32 %v303, %v328
    %v350 = vadd.f32 %v304, %v327
    %v351 = vadd.f32 %v305, %v331
    %v352 = vadd.f32 %v306, %v330
    %v353 = vadd.f32 %v307, %v334
    %v354 = vadd.f32 %v308, %v333
    %vm355 = vcmask 1045504
    %v356 = vrot.slane %v299, 2
    %v357 = vrot.slane %v300, 2
    %v358 = vsel %vm355, %v356, %v357
    %v359 = vrot.slane %v301, 2
    %v360 = vrot.slane %v302, 2
    %v361 = vsel %vm355, %v359, %v360
    %v362 = vrot.slane %v303, 2
    %v363 = vrot.slane %v304, 2
    %v364 = vsel %vm355, %v362, %v363
    %v365 = vrot.slane %v305, 2
    %v366 = vrot.slane %v306, 2
    %v367 = vsel %vm355, %v365, %v366
    %v368 = vrot.slane %v307, 2
    %v369 = vrot.slane %v308, 2
    %v370 = vsel %vm355, %v368, %v369
    %v381 = vadd.f32 %v345, %v358
    %v382 = vadd.f32 %v346, %v357
    %v383 = vadd.f32 %v347, %v361
    %v384 = vadd.f32 %v348, %v360
    %v385 = vadd.f32 %v349, %v364
    %v386 = vadd.f32 %v350, %v363
    %v387 = vadd.f32 %v351, %v367
    %v388 = vadd.f32 %v352, %v366
    %v389 = vadd.f32 %v353, %v370
    %v390 = vadd.f32 %v354, %v369
    %vm391 = vcmask 1044480
    %v392 = vrot.slane %v299, 3
    %v393 = vrot.slane %v300, 3
    %v394 = vsel %vm391, %v392, %v393
    %v395 = vrot.slane %v301, 3
    %v396 = vrot.slane %v302, 3
    %v397 = vsel %vm391, %v395, %v396
    %v398 = vrot.slane %v303, 3
    %v399 = vrot.slane %v304, 3
    %v400 = vsel %vm391, %v398, %v399
    %v401 = vrot.slane %v305, 3
    %v402 = vrot.slane %v306, 3
    %v403 = vsel %vm391, %v401, %v402
    %v404 = vrot.slane %v307, 3
    %v405 = vrot.slane %v308, 3
    %v406 = vsel %vm391, %v404, %v405
    %v417 = vadd.f32 %v381, %v394
    %v418 = vadd.f32 %v382, %v393
    %v419 = vadd.f32 %v383, %v397
    %v420 = vadd.f32 %v384, %v396
    %v421 = vadd.f32 %v385, %v400
    %v422 = vadd.f32 %v386, %v399
    %v423 = vadd.f32 %v387, %v403
    %v424 = vadd.f32 %v388, %v402
    %v425 = vadd.f32 %v389, %v406
    %v426 = vadd.f32 %v390, %v405
    %vm427 = vcmask 1043456
    %v428 = vrot.slane %v299, 4
    %v429 = vrot.slane %v300, 4
    %v430 = vsel %vm427, %v428, %v429
    %v431 = vrot.slane %v301, 4
    %v432 = vrot.slane %v302, 4
    %v433 = vsel %vm427, %v431, %v432
    %v434 = vrot.slane %v303, 4
    %v435 = vrot.slane %v304, 4
    %v436 = vsel %vm427, %v434, %v435
    %v437 = vrot.slane %v305, 4
    %v438 = vrot.slane %v306, 4
    %v439 = vsel %vm427, %v437, %v438
    %v440 = vrot.slane %v307, 4
    %v441 = vrot.slane %v308, 4
    %v442 = vsel %vm427, %v440, %v441
    %v453 = vadd.f32 %v417, %v430
    %v454 = vadd.f32 %v418, %v429
    %v455 = vadd.f32 %v419, %v433
    %v456 = vadd.f32 %v420, %v432
    %v457 = vadd.f32 %v421, %v436
    %v458 = vadd.f32 %v422, %v435
    %v459 = vadd.f32 %v423, %v439
    %v460 = vadd.f32 %v424, %v438
    %v461 = vadd.f32 %v425, %v442
    %v462 = vadd.f32 %v426, %v441
    %vm463 = vcmask 1042432
    %v464 = vrot.slane %v299, 5
    %v465 = vrot.slane %v300, 5
    %v466 = vsel %vm463, %v464, %v465
    %v467 = vrot.slane %v301, 5
    %v468 = vrot.slane %v302, 5
    %v469 = vsel %vm463, %v467, %v468
    %v470 = vrot.slane %v303, 5
    %v471 = vrot.slane %v304, 5
    %v472 = vsel %vm463, %v470, %v471
    %v473 = vrot.slane %v305, 5
    %v474 = vrot.slane %v306, 5
    %v475 = vsel %vm463, %v473, %v474
    %v476 = vrot.slane %v307, 5
    %v477 = vrot.slane %v308, 5
    %v478 = vsel %vm463, %v476, %v477
    %v489 = vadd.f32 %v453, %v466
    %v490 = vadd.f32 %v454, %v465
    %v491 = vadd.f32 %v455, %v469
    %v492 = vadd.f32 %v456, %v468
    %v493 = vadd.f32 %v457, %v472
    %v494 = vadd.f32 %v458, %v471
    %v495 = vadd.f32 %v459, %v475
    %v496 = vadd.f32 %v460, %v474
    %v497 = vadd.f32 %v461, %v478
    %v498 = vadd.f32 %v462, %v477
    %vm499 = vcmask 1041408
    %v500 = vrot.slane %v299, 6
    %v501 = vrot.slane %v300, 6
    %v502 = vsel %vm499, %v500, %v501
    %v503 = vrot.slane %v301, 6
    %v504 = vrot.slane %v302, 6
    %v505 = vsel %vm499, %v503, %v504
    %v506 = vrot.slane %v303, 6
    %v507 = vrot.slane %v304, 6
    %v508 = vsel %vm499, %v506, %v507
    %v509 = vrot.slane %v305, 6
    %v510 = vrot.slane %v306, 6
    %v511 = vsel %vm499, %v509, %v510
    %v512 = vrot.slane %v307, 6
    %v513 = vrot.slane %v308, 6
    %v514 = vsel %vm499, %v512, %v513
    %v525 = vadd.f32 %v489, %v502
    %v526 = vadd.f32 %v490, %v501
    %v527 = vadd.f32 %v491, %v505
    %v528 = vadd.f32 %v492, %v504
    %v529 = vadd.f32 %v493, %v508
    %v530 = vadd.f32 %v494, %v507
    %v531 = vadd.f32 %v495, %v511
    %v532 = vadd.f32 %v496, %v510
    %v533 = vadd.f32 %v497, %v514
    %v534 = vadd.f32 %v498, %v513
    %v535 = vmul.f32 %v525, 0.020408163
    %v536 = vmul.f32 %v526, 0.020408163
    %v537 = vmul.f32 %v527, 0.020408163
    %v538 = vmul.f32 %v528, 0.020408163
    %v539 = vmul.f32 %v529, 0.020408163
    %v540 = vmul.f32 %v530, 0.020408163
    %v541 = vmul.f32 %v531, 0.020408163
    %v542 = vmul.f32 %v532, 0.020408163
    %v543 = vmul.f32 %v533, 0.020408163
    %v544 = vmul.f32 %v534, 0.020408163
    %v545 = vld [vmem:[%s2] sm:$0x1]
    %v546 = vld [vmem:[%s3] sm:$0x1]
    %v547 = vld [vmem:[%s4] sm:$0x1]
    %v548 = vmul.f32 %v535, %v535
    %v549 = vmul.f32 %v536, %v536
    %v550 = vsub.f32 %v539, %v548
    %v551 = vsub.f32 %v540, %v549
    %v552 = vmul.f32 %v550, 1.0208334
    %v553 = vmul.f32 %v551, 1.0208334
    %v554 = vmul.f32 %v537, %v537
    %v555 = vmul.f32 %v538, %v538
    %v556 = vsub.f32 %v541, %v554
    %v557 = vsub.f32 %v542, %v555
    %v558 = vmul.f32 %v556, 1.0208334
    %v559 = vmul.f32 %v557, 1.0208334
    %v560 = vmul.f32 %v535, %v537
    %v561 = vmul.f32 %v536, %v538
    %v562 = vsub.f32 %v543, %v560
    %v563 = vsub.f32 %v544, %v561
    %v564 = vmul.f32 %v562, 1.0208334
    %v565 = vmul.f32 %v563, 1.0208334
    %v566 = vmul.f32 %v535, 2.0
    %v567 = vmul.f32 %v536, 2.0
    %v568 = vmul.f32 %v566, %v537
    %v569 = vmul.f32 %v567, %v538
    %v571 = vlaneseq
    %v572 = vshrl.u32 %v571, 7
    %v573 = vsub.s32 0, %v572
    %v574 = vrot.slane %v545, %v573
    %v576 = vadd.f32 %v568, %v574
    %v577 = vadd.f32 %v569, %v574
    %v578 = vmul.f32 %v564, 2.0
    %v579 = vmul.f32 %v565, 2.0
    %v581 = vlaneseq
    %v582 = vshrl.u32 %v581, 7
    %v583 = vsub.s32 0, %v582
    %v584 = vrot.slane %v546, %v583
    %v586 = vadd.f32 %v578, %v584
    %v587 = vadd.f32 %v579, %v584
    %v588 = vadd.f32 %v548, %v554
    %v589 = vadd.f32 %v549, %v555
    %v590 = vadd.f32 %v588, %v574
    %v591 = vadd.f32 %v589, %v574
    %v592 = vadd.f32 %v552, %v558
    %v593 = vadd.f32 %v553, %v559
    %v594 = vadd.f32 %v592, %v584
    %v595 = vadd.f32 %v593, %v584
    %v596 = vmul.f32 %v576, %v586
    %v597 = vmul.f32 %v577, %v587
    %v598 = vmul.f32 %v590, %v594
    %v599 = vmul.f32 %v591, %v595
    %v600 = vrcp.pop %v598
    %v601 = vrcp.pop %v599
    %v602 = vmul.f32 %v596, %v600
    %v603 = vmul.f32 %v597, %v601
    %v605 = vlaneseq
    %v606 = vshrl.u32 %v605, 7
    %v607 = vsub.s32 0, %v606
    %v608 = vrot.slane %v547, %v607
    %v610 = vmul.f32 %v602, %v608
    %v611 = vmul.f32 %v603, %v608
    %vm612 = vcmask 211968
    %v613 = vsel %vm612, %v610, 0.0
    %vm614 = vcmask 205824
    %v615 = vsel %vm614, %v611, 0.0
    %v616 = vadd.f32 %v613, %v615
    %617 = vadd.xlane.f32.xlu0 %v616
    %v618 = vpop.xlane.xlu0 %617
    %v619 = vrot.slane %v618, 4
    %v620 = vadd.f32 %v618, %v619
    %v621 = vrot.slane %v620, 2
    %v622 = vadd.f32 %v620, %v621
    %v623 = vrot.slane %v622, 1
    %v624 = vadd.f32 %v622, %v623
    %s625 = vtos %v624
    %v626 = vstv %s625
    %vm627 = vcmask 0
    %628 = vst.msk [vmem:[#allocation7] sm:$0x1] %vm627, %v626
    // Predicated region
    $region30: #{tpu_custom_call.1} parent=1 // pred_check
      _
    $region31: #{tpu_custom_call.1} parent=1 // pred_check_branch
      %630 = sbr.rel (0) target = $region33
    $region32: #{tpu_custom_call.1} parent=1 // pred_region
      %s632 = ssub.s32 16, 16
      %633 = vsyncadd [#allocation4], %s632
      %s635 = sshll.u32 [#allocation7], 4
      %s636 = int_to_ptr.vmem [resolvable:$true] %s635
      %638 = dma.vmem_to_hbm [thread:$0]  %s636, 16, %s5, [#allocation4]
    $region33: #{tpu_custom_call.1} parent=1 // pred_fallthru
      _
    // Predicated region
    $region34: #{tpu_custom_call.1} parent=1 // pred_check
      _
    $region35: #{tpu_custom_call.1} parent=1 // pred_check_branch
      %640 = sbr.rel (0) target = $region37
    $region36: #{tpu_custom_call.1} parent=1 // pred_region
      %641 = dma.done [#allocation4], 16
    $region37: #{tpu_custom_call.1} parent=1 // pred_fallthru
      _
    %642 = vsyncpa [#allocation3], 1
    %643 = vsyncpa [#allocation6], 1
    %644 = vsyncpa [#allocation4], 1

</llo_original>
